<compile_context>
chip_gen: v5e
topology: v5e:2x2
jax: 0.10.0
libtpu: 0.0.40
codegen_flags: <defaults>
</compile_context>

<pallas_src>
import functools

import numpy as np
import jax
import jax.numpy as jnp
from jax.experimental import pallas as pl
from jax.experimental.pallas import tpu as pltpu


_IGNORE_INDEX = -100                      # PyTorch nn.CrossEntropyLoss default
_VMEM_BUDGET_BYTES = 8 * 1024 * 1024      # per-stream budget (safe for v7x 64 MiB VMEM)


def _pick_tile_rows(n_rows, row_bytes):
    """Largest batch tile (multiple of 8, <=1024 rows) whose double-buffered stream fits."""
    max_rows = max(8, (_VMEM_BUDGET_BYTES // (2 * max(int(row_bytes), 1))) // 8 * 8)
    tb = min(1024, max_rows)
    return n_rows if n_rows <= tb else tb


def _smem_spec():
    return pl.BlockSpec(memory_space=pltpu.MemorySpace.SMEM)


# ----------------------------------------------------------------------------
# Kernels
# ----------------------------------------------------------------------------
def _ce_uncertainty_kernel(logvar_ref, labels_ref, logits_ref, out_ref, *acc_refs,
                           class_dims, n_rows, tile_rows):
    """Streaming sum of per-class-group CrossEntropy('mean') + uncertainty weighting."""
    n_groups = len(class_dims)
    sum_refs = acc_refs[:n_groups]
    cnt_refs = acc_refs[n_groups:]

    i = pl.program_id(0)

    @pl.when(i == 0)
    def _init():
        for r in acc_refs:
            r[...] = jnp.zeros_like(r)

    logits = logits_ref[...].astype(jnp.float32)            # (TB, C_total)
    tb, c_total = logits.shape

    # Rows that really exist (partial last tile) -> mask, no host re-padding.
    row = jax.lax.broadcasted_iota(jnp.int32, (tb, 1), 0) + i * tile_rows
    row_valid = row < n_rows                                  # (TB, 1)
    logits = jnp.where(row_valid, logits, 0.0)                # scrub padded-row garbage

    col = jax.lax.broadcasted_iota(jnp.int32, (tb, c_total), 1)

    # Single-pass masked log-softmax: build per-column group-max map, one exp
    # over the whole tile, then masked per-group denominators (no lane slicing).
    neg_big = jnp.float32(-1e30)
    group_max = jnp.zeros_like(logits)
    masks, maxes = [], []
    start = 0
    for dim in class_dims:                                    # static unroll
        m = (col >= start) & (col < start + dim)
        gm = jnp.max(jnp.where(m, logits, neg_big), axis=-1, keepdims=True)   # (TB,1)
        group_max = jnp.where(m, gm, group_max)
        masks.append(m)
        maxes.append(gm)
        start += dim

    e = jnp.exp(logits - group_max)                           # one EUP pass

    start = 0
    for g, dim in enumerate(class_dims):
        denom = jnp.sum(jnp.where(masks[g], e, 0.0), axis=-1, keepdims=True)
        lse = maxes[g] + jnp.log(denom)                       # (TB, 1)
        lbl = labels_ref[:, g:g + 1]                          # (TB, 1) int32
        true_logit = jnp.sum(jnp.where(col == start + lbl, logits, 0.0),
                             axis=-1, keepdims=True)
        valid = row_valid & (lbl != _IGNORE_INDEX)            # (TB, 1)
        tok_loss = jnp.where(valid, lse - true_logit, 0.0)
        sum_refs[g][...] += jnp.sum(tok_loss, axis=0, keepdims=True)
        cnt_refs[g][...] += jnp.sum(valid.astype(jnp.float32), axis=0, keepdims=True)
        start += dim

    @pl.when(i == pl.num_programs(0) - 1)
    def _finalize():
        total = jnp.zeros((1, 1), jnp.float32)
        for g in range(n_groups):
            total = total + sum_refs[g][...] / cnt_refs[g][...]
        lv = jnp.full((1, 1), logvar_ref[0, 0], dtype=jnp.float32)
        out_ref[...] = jnp.exp(-lv) * total + lv


def _mse_uncertainty_kernel(logvar_ref, ytrue_ref, pred_ref, out_ref, sum_ref,
                            *, n_rows, n_cols, tile_rows):
    """Streaming MSELoss('mean') + uncertainty weighting."""
    i = pl.program_id(0)

    @pl.when(i == 0)
    def _init():
        sum_ref[...] = jnp.zeros_like(sum_ref)

    pred = pred_ref[...].astype(jnp.float32)
    yt = ytrue_ref[...].astype(jnp.float32)
    tb = pred.shape[0]
    row = jax.lax.broadcasted_iota(jnp.int32, (tb, 1), 0) + i * tile_rows
    row_valid = row < n_rows
    diff = jnp.where(row_valid, pred - yt, 0.0)
    sum_ref[...] += jnp.sum(jnp.sum(diff * diff, axis=1, keepdims=True),
                            axis=0, keepdims=True)

    @pl.when(i == pl.num_programs(0) - 1)
    def _finalize():
        mse = sum_ref[...] / jnp.float32(n_rows * n_cols)
        lv = jnp.full((1, 1), logvar_ref[0, 0], dtype=jnp.float32)
        out_ref[...] = jnp.exp(-lv) * mse + lv


# ----------------------------------------------------------------------------
# Wrappers (pallas_call plumbing)
# ----------------------------------------------------------------------------
def ce_uncertainty_loss(logits, labels, log_variance, class_dims, *, tile_rows=None):
    logits = jnp.asarray(logits)
    labels = jnp.asarray(labels).astype(jnp.int32)
    if labels.ndim == 1:
        labels = labels[:, None]
    log_variance = jnp.asarray(log_variance, dtype=jnp.float32).reshape(1, 1)

    b, c_total = logits.shape
    n_groups = len(class_dims)
    assert labels.shape == (b, n_groups)

    itemsize = jnp.dtype(logits.dtype).itemsize
    row_bytes = c_total * itemsize + n_groups * 4
    tb = tile_rows if tile_rows is not None else _pick_tile_rows(b, row_bytes)
    if tb < b:
        assert tb % 8 == 0, "batch tile must be a multiple of 8"
    n_tiles = pl.cdiv(b, tb)

    kernel = functools.partial(_ce_uncertainty_kernel,
                               class_dims=tuple(int(d) for d in class_dims),
                               n_rows=b, tile_rows=tb)

    cost = pl.CostEstimate(
        flops=int(6 * b * c_total),
        transcendentals=int(b * c_total),
        bytes_accessed=int(b * c_total * itemsize + b * n_groups * 4 + 8))

    grid_spec = pltpu.PrefetchScalarGridSpec(
        num_scalar_prefetch=0,
        grid=(n_tiles,),
        in_specs=[
            _smem_spec(),                                    # log_variance scalar (SMEM)
            pl.BlockSpec((tb, n_groups), lambda i: (i, 0)),  # labels
            pl.BlockSpec((tb, c_total), lambda i: (i, 0)),   # logits (streamed)
        ],
        out_specs=pl.BlockSpec((1, 1), lambda i: (0, 0)),    # resident accumulator
        scratch_shapes=[pltpu.VMEM((1, 1), jnp.float32)
                        for _ in range(2 * n_groups)])

    return pl.pallas_call(
        kernel,
        out_shape=jax.ShapeDtypeStruct((1, 1), jnp.float32),
        grid_spec=grid_spec,
        compiler_params=pltpu.CompilerParams(
            dimension_semantics=("arbitrary",),
            vmem_limit_bytes=32 * 1024 * 1024),
        cost_estimate=cost,
    )(log_variance, labels, logits)


def mse_uncertainty_loss(pred, y_true, log_variance, *, tile_rows=None):
    pred = jnp.asarray(pred)
    yt = jnp.asarray(y_true).astype(jnp.float32)
    if pred.ndim == 1:
        pred = pred[:, None]
        yt = yt[:, None]
    elif pred.ndim > 2:
        pred = pred.reshape(-1, pred.shape[-1])
        yt = yt.reshape(-1, yt.shape[-1])
    log_variance = jnp.asarray(log_variance, dtype=jnp.float32).reshape(1, 1)

    b, f = pred.shape
    itemsize = jnp.dtype(pred.dtype).itemsize
    row_bytes = f * (itemsize + 4)
    tb = tile_rows if tile_rows is not None else _pick_tile_rows(b, row_bytes)
    if tb < b:
        assert tb % 8 == 0, "batch tile must be a multiple of 8"
    n_tiles = pl.cdiv(b, tb)

    kernel = functools.partial(_mse_uncertainty_kernel,
                               n_rows=b, n_cols=f, tile_rows=tb)

    cost = pl.CostEstimate(flops=int(3 * b * f), transcendentals=1,
                           bytes_accessed=int(b * f * (itemsize + 4) + 8))

    grid_spec = pltpu.PrefetchScalarGridSpec(
        num_scalar_prefetch=0,
        grid=(n_tiles,),
        in_specs=[
            _smem_spec(),                               # log_variance scalar (SMEM)
            pl.BlockSpec((tb, f), lambda i: (i, 0)),    # y_true
            pl.BlockSpec((tb, f), lambda i: (i, 0)),    # predictions
        ],
        out_specs=pl.BlockSpec((1, 1), lambda i: (0, 0)),
        scratch_shapes=[pltpu.VMEM((1, 1), jnp.float32)])

    return pl.pallas_call(
        kernel,
        out_shape=jax.ShapeDtypeStruct((1, 1), jnp.float32),
        grid_spec=grid_spec,
        compiler_params=pltpu.CompilerParams(
            dimension_semantics=("arbitrary",),
            vmem_limit_bytes=32 * 1024 * 1024),
        cost_estimate=cost,
    )(log_variance, yt, pred)


class UncertaintyWeightMultiTaskLoss:
    """JAX/Pallas port of the PyTorch module (forward only)."""

    def __init__(self, task_class_dims):
        self.task_class_dims = task_class_dims
        # nn.Parameter(torch.tensor([0.0])) for every task -> deterministic init.
        self.log_variances = {
            task: jnp.zeros((1, 1), dtype=jnp.float32) for task in task_class_dims
        }

    def __call__(self, x, y_true, output):
        task_type = x["task_type"]
        task_name = x["task_name"]
        log_variance = self.log_variances[task_name]
        class_dims = self.task_class_dims[task_name]

        if task_type == "classification":
            return ce_uncertainty_loss(output, y_true, log_variance, class_dims)
        elif task_type == "sequence labeling":
            # TODO(synk): ragged per-sequence python-list y_true handling has no Pallas
            # equivalent; it is flattened host-side (numpy) into ONE transfer + ONE launch.
            y_true_np = [np.vstack(seq_y_true).T for seq_y_true in y_true]
            labels_np = np.concatenate(
                [yt[: len(pred)] for yt, pred in zip(y_true_np, output)], axis=0
            ).astype(np.int32)
            if all(isinstance(p, np.ndarray) for p in output):
                logits_cat = jnp.asarray(np.concatenate(output, axis=0))
            else:
                logits_cat = jnp.concatenate([jnp.asarray(p) for p in output], axis=0)
            return ce_uncertainty_loss(logits_cat, labels_np, log_variance, class_dims)
        elif task_type == "regression":
            return mse_uncertainty_loss(output, y_true, log_variance)
        else:
            raise ValueError


# ----------------------------------------------------------------------------
# Pure-JAX references (for correctness checks)
# ----------------------------------------------------------------------------
def _ref_ce(logits, labels, class_dims, lv):
    logits = jnp.asarray(logits, jnp.float32)
    labels = jnp.asarray(labels, jnp.int32)
    loss = 0.0
    start = 0
    for g, d in enumerate(class_dims):
        sl = logits[:, start:start + d]
        logp = jax.nn.log_softmax(sl, axis=-1)
        lbl = labels[:, g]
        valid = lbl != _IGNORE_INDEX
        safe = jnp.where(valid, lbl, 0)
        tok = -jnp.take_along_axis(logp, safe[:, None], axis=1)[:, 0]
        loss = loss + jnp.sum(jnp.where(valid, tok, 0.0)) / jnp.sum(valid).astype(jnp.float32)
        start += d
    return jnp.exp(-lv) * loss + lv


def _ref_mse(pred, yt, lv):
    mse = jnp.mean((jnp.asarray(pred, jnp.float32) - jnp.asarray(yt, jnp.float32)) ** 2)
    return jnp.exp(-lv) * mse + lv


# ----------------------------------------------------------------------------
if __name__ == "__main__":
    key = jax.random.PRNGKey(0)
    ks = jax.random.split(key, 8)

    task_class_dims = {
        "cls_task": [3, 5],   # classification: two class groups -> output [B, 8]
        "seq_task": [3],      # sequence labeling: one class group of 3 labels
        "reg_task": [1],      # regression (dims unused for loss)
    }
    loss_mod = UncertaintyWeightMultiTaskLoss(task_class_dims)

    # ---- 1) classification, single-tile path ------------------------------
    B = 8
    c_total = sum(task_class_dims["cls_task"])
    cls_logits = jax.random.normal(ks[0], (B, c_total), jnp.float32)
    cls_labels = jnp.stack([jax.random.randint(ks[1], (B,), 0, 3),
                            jax.random.randint(ks[2], (B,), 0, 5)], axis=1).astype(jnp.int32)
    out1 = loss_mod({"task_type": "classification", "task_name": "cls_task"},
                    cls_labels, cls_logits)
    jax.block_until_ready(out1)
    ref1 = _ref_ce(cls_logits, cls_labels, task_class_dims["cls_task"],
                   loss_mod.log_variances["cls_task"][0, 0])
    np.testing.assert_allclose(float(out1[0, 0]), float(ref1), rtol=1e-5, atol=1e-6)

    # ---- 2) classification, multi-tile grid + partial tile + ignore_index -
    B2 = 20
    logits2 = jax.random.normal(ks[3], (B2, c_total), jnp.float32)
    labels2 = jnp.stack([jax.random.randint(ks[4], (B2,), 0, 3),
                         jax.random.randint(ks[5], (B2,), 0, 5)], axis=1).astype(jnp.int32)
    labels2 = labels2.at[3, 0].set(_IGNORE_INDEX).at[11, 1].set(_IGNORE_INDEX)
    out2 = ce_uncertainty_loss(logits2, labels2, loss_mod.log_variances["cls_task"],
                               task_class_dims["cls_task"], tile_rows=8)
    jax.block_until_ready(out2)
    ref2 = _ref_ce(logits2, labels2, task_class_dims["cls_task"],
                   loss_mod.log_variances["cls_task"][0, 0])
    np.testing.assert_allclose(float(out2[0, 0]), float(ref2), rtol=1e-5, atol=1e-6)

    # ---- 3) sequence labeling (ragged host flatten -> one kernel) ---------
    lens = [5, 7]
    seq_outputs = [jax.random.normal(ks[6], (lens[0], 3), jnp.float32),
                   jax.random.normal(ks[7], (lens[1], 3), jnp.float32)]
    rng = np.random.default_rng(0)
    seq_y_true = [[list(rng.integers(0, 3, size=l))] for l in lens]
    out3 = loss_mod({"task_type": "sequence labeling", "task_name": "seq_task"},
                    seq_y_true, seq_outputs)
    jax.block_until_ready(out3)
    cat_logits = jnp.concatenate(seq_outputs, axis=0)
    cat_labels = jnp.asarray(np.concatenate([np.vstack(s).T for s in seq_y_true],
                                            axis=0).astype(np.int32))
    ref3 = _ref_ce(cat_logits, cat_labels, task_class_dims["seq_task"],
                   loss_mod.log_variances["seq_task"][0, 0])
    np.testing.assert_allclose(float(out3[0, 0]), float(ref3), rtol=1e-5, atol=1e-6)

    # ---- 4) regression: single-tile and multi-tile ------------------------
    reg_pred = jax.random.normal(ks[0], (B, 4), jnp.float32)
    reg_true = jax.random.normal(ks[1], (B, 4), jnp.float32)
    out4 = loss_mod({"task_type": "regression", "task_name": "reg_task"},
                    reg_true, reg_pred)
    jax.block_until_ready(out4)
    ref4 = _ref_mse(reg_pred, reg_true, loss_mod.log_variances["reg_task"][0, 0])
    np.testing.assert_allclose(float(out4[0, 0]), float(ref4), rtol=1e-5, atol=1e-6)

    reg_pred2 = jax.random.normal(ks[2], (20, 4), jnp.float32)
    reg_true2 = jax.random.normal(ks[3], (20, 4), jnp.float32)
    out5 = mse_uncertainty_loss(reg_pred2, reg_true2,
                                loss_mod.log_variances["reg_task"], tile_rows=8)
    jax.block_until_ready(out5)
    ref5 = _ref_mse(reg_pred2, reg_true2, loss_mod.log_variances["reg_task"][0, 0])
    np.testing.assert_allclose(float(out5[0, 0]), float(ref5), rtol=1e-5, atol=1e-6)

    print("KERNEL_OK")
</pallas_src>

<mosaic_0001>
module attributes {stable_mosaic.version = 11 : i64} {
  func.func @_ce_uncertainty_kernel(%arg0: i32, %arg1: memref<1x1xf32, #tpu.memory_space<smem>>, %arg2: memref<8x2xi32, #tpu.memory_space<vmem>>, %arg3: memref<8x8xf32, #tpu.memory_space<vmem>>, %arg4: memref<1x1xf32, #tpu.memory_space<vmem>>, %arg5: memref<1x1xf32, #tpu.memory_space<vmem>>, %arg6: memref<1x1xf32, #tpu.memory_space<vmem>>, %arg7: memref<1x1xf32, #tpu.memory_space<vmem>>, %arg8: memref<1x1xf32, #tpu.memory_space<vmem>>) attributes {dimension_semantics = [#tpu.dimension_semantics<arbitrary>], iteration_bounds = array<i64: 1>, scalar_prefetch = 0 : i64, scratch_operands = 4 : i64, tpu.core_type = #tpu.core_type<tc>, window_params = [{transform_indices = @transform_0, window_bounds = array<i64: 1, 1>}, {transform_indices = @transform_1, window_bounds = array<i64: 8, 2>}, {transform_indices = @transform_2, window_bounds = array<i64: 8, 8>}, {pipeline_mode = #tpu.pipeline_mode<synchronous>, transform_indices = @transform_3, window_bounds = array<i64: 1, 1>}]} {
    %c0_i32 = arith.constant 0 : i32
    %0 = arith.cmpi eq, %arg0, %c0_i32 : i32
    %1 = arith.extui %0 : i1 to i32
    %c0_i32_0 = arith.constant 0 : i32
    %2 = arith.cmpi ne, %1, %c0_i32_0 : i32
    scf.if %2 {
      %cst_49 = arith.constant 0.000000e+00 : f32
      %111 = vector.broadcast %cst_49 : f32 to vector<1x1xf32>
      %c0_50 = arith.constant 0 : index
      %c0_51 = arith.constant 0 : index
      %112 = vector.load %arg5[%c0_50, %c0_51] : memref<1x1xf32, #tpu.memory_space<vmem>>, vector<1x1xf32>
      tpu.vector_store %arg5[%c0_50, %c0_51], %111 {strides = array<i32>} : memref<1x1xf32, #tpu.memory_space<vmem>>, vector<1x1xf32>,
      %cst_52 = arith.constant 0.000000e+00 : f32
      %113 = vector.broadcast %cst_52 : f32 to vector<1x1xf32>
      %c0_53 = arith.constant 0 : index
      %c0_54 = arith.constant 0 : index
      %114 = vector.load %arg6[%c0_53, %c0_54] : memref<1x1xf32, #tpu.memory_space<vmem>>, vector<1x1xf32>
      tpu.vector_store %arg6[%c0_53, %c0_54], %113 {strides = array<i32>} : memref<1x1xf32, #tpu.memory_space<vmem>>, vector<1x1xf32>,
      %cst_55 = arith.constant 0.000000e+00 : f32
      %115 = vector.broadcast %cst_55 : f32 to vector<1x1xf32>
      %c0_56 = arith.constant 0 : index
      %c0_57 = arith.constant 0 : index
      %116 = vector.load %arg7[%c0_56, %c0_57] : memref<1x1xf32, #tpu.memory_space<vmem>>, vector<1x1xf32>
      tpu.vector_store %arg7[%c0_56, %c0_57], %115 {strides = array<i32>} : memref<1x1xf32, #tpu.memory_space<vmem>>, vector<1x1xf32>,
      %cst_58 = arith.constant 0.000000e+00 : f32
      %117 = vector.broadcast %cst_58 : f32 to vector<1x1xf32>
      %c0_59 = arith.constant 0 : index
      %c0_60 = arith.constant 0 : index
      %118 = vector.load %arg8[%c0_59, %c0_60] : memref<1x1xf32, #tpu.memory_space<vmem>>, vector<1x1xf32>
      tpu.vector_store %arg8[%c0_59, %c0_60], %117 {strides = array<i32>} : memref<1x1xf32, #tpu.memory_space<vmem>>, vector<1x1xf32>,
    } else {
    }
    %c0 = arith.constant 0 : index
    %c0_1 = arith.constant 0 : index
    %3 = vector.load %arg3[%c0, %c0_1] : memref<8x8xf32, #tpu.memory_space<vmem>>, vector<8x8xf32>
    %4 = tpu.iota {dimensions = array<i32: 0>} : vector<8x1xi32>
    %c8_i32 = arith.constant 8 : i32
    %5 = arith.muli %arg0, %c8_i32 : i32
    %6 = vector.broadcast %5 : i32 to vector<8x1xi32>
    %7 = arith.addi %4, %6 : vector<8x1xi32>
    %c8_i32_2 = arith.constant 8 : i32
    %8 = vector.broadcast %c8_i32_2 : i32 to vector<8x1xi32>
    %9 = arith.cmpi slt, %7, %8 : vector<8x1xi32>
    %cst = arith.constant 0.000000e+00 : f32
    %10 = vector.shape_cast %9 : vector<8x1xi1> to vector<8x1xi1>
    %11 = vector.broadcast %10 : vector<8x1xi1> to vector<8x8xi1>
    %12 = vector.broadcast %cst : f32 to vector<8x8xf32>
    %13 = arith.select %11, %3, %12 : vector<8x8xi1>, vector<8x8xf32>
    %14 = tpu.iota {dimensions = array<i32: 1>} : vector<8x8xi32>
    %cst_3 = arith.constant 0.000000e+00 : f32
    %15 = vector.broadcast %cst_3 : f32 to vector<8x8xf32>
    %c0_i32_4 = arith.constant 0 : i32
    %16 = vector.broadcast %c0_i32_4 : i32 to vector<8x8xi32>
    %17 = arith.cmpi sge, %14, %16 : vector<8x8xi32>
    %c3_i32 = arith.constant 3 : i32
    %18 = vector.broadcast %c3_i32 : i32 to vector<8x8xi32>
    %19 = arith.cmpi slt, %14, %18 : vector<8x8xi32>
    %20 = arith.andi %17, %19 : vector<8x8xi1>
    %cst_5 = arith.constant -1.000000e+30 : f32
    %21 = vector.broadcast %cst_5 : f32 to vector<8x8xf32>
    %22 = arith.select %20, %13, %21 : vector<8x8xi1>, vector<8x8xf32>
    %cst_6 = arith.constant dense<0xFF800000> : vector<8xf32>
    %23 = vector.multi_reduction <maximumf>, %22, %cst_6 [1] : vector<8x8xf32> to vector<8xf32>
    %24 = vector.shape_cast %23 : vector<8xf32> to vector<8x1xf32>
    %25 = vector.shape_cast %24 : vector<8x1xf32> to vector<8x1xf32>
    %26 = vector.broadcast %25 : vector<8x1xf32> to vector<8x8xf32>
    %27 = arith.select %20, %26, %15 : vector<8x8xi1>, vector<8x8xf32>
    %c3_i32_7 = arith.constant 3 : i32
    %28 = vector.broadcast %c3_i32_7 : i32 to vector<8x8xi32>
    %29 = arith.cmpi sge, %14, %28 : vector<8x8xi32>
    %c8_i32_8 = arith.constant 8 : i32
    %30 = vector.broadcast %c8_i32_8 : i32 to vector<8x8xi32>
    %31 = arith.cmpi slt, %14, %30 : vector<8x8xi32>
    %32 = arith.andi %29, %31 : vector<8x8xi1>
    %cst_9 = arith.constant -1.000000e+30 : f32
    %33 = vector.broadcast %cst_9 : f32 to vector<8x8xf32>
    %34 = arith.select %32, %13, %33 : vector<8x8xi1>, vector<8x8xf32>
    %cst_10 = arith.constant dense<0xFF800000> : vector<8xf32>
    %35 = vector.multi_reduction <maximumf>, %34, %cst_10 [1] : vector<8x8xf32> to vector<8xf32>
    %36 = vector.shape_cast %35 : vector<8xf32> to vector<8x1xf32>
    %37 = vector.shape_cast %36 : vector<8x1xf32> to vector<8x1xf32>
    %38 = vector.broadcast %37 : vector<8x1xf32> to vector<8x8xf32>
    %39 = arith.select %32, %38, %27 : vector<8x8xi1>, vector<8x8xf32>
    %40 = arith.subf %13, %39 : vector<8x8xf32>
    %41 = math.exp %40 : vector<8x8xf32>
    %cst_11 = arith.constant 0.000000e+00 : f32
    %42 = vector.broadcast %cst_11 : f32 to vector<8x8xf32>
    %43 = arith.select %20, %41, %42 : vector<8x8xi1>, vector<8x8xf32>
    %cst_12 = arith.constant dense<0.000000e+00> : vector<8xf32>
    %44 = vector.multi_reduction <add>, %43, %cst_12 [1] : vector<8x8xf32> to vector<8xf32>
    %45 = vector.shape_cast %44 : vector<8xf32> to vector<8x1xf32>
    %46 = math.log %45 : vector<8x1xf32>
    %47 = arith.addf %24, %46 : vector<8x1xf32>
    %c0_13 = arith.constant 0 : index
    %c0_14 = arith.constant 0 : index
    %48 = vector.load %arg2[%c0_13, %c0_14] : memref<8x2xi32, #tpu.memory_space<vmem>>, vector<8x1xi32>
    %c0_i32_15 = arith.constant 0 : i32
    %49 = vector.broadcast %c0_i32_15 : i32 to vector<8x1xi32>
    %50 = arith.addi %49, %48 : vector<8x1xi32>
    %51 = vector.broadcast %50 : vector<8x1xi32> to vector<8x8xi32>
    %52 = arith.cmpi eq, %14, %51 : vector<8x8xi32>
    %cst_16 = arith.constant 0.000000e+00 : f32
    %53 = vector.broadcast %cst_16 : f32 to vector<8x8xf32>
    %54 = arith.select %52, %13, %53 : vector<8x8xi1>, vector<8x8xf32>
    %cst_17 = arith.constant dense<0.000000e+00> : vector<8xf32>
    %55 = vector.multi_reduction <add>, %54, %cst_17 [1] : vector<8x8xf32> to vector<8xf32>
    %56 = vector.shape_cast %55 : vector<8xf32> to vector<8x1xf32>
    %c-100_i32 = arith.constant -100 : i32
    %57 = vector.broadcast %c-100_i32 : i32 to vector<8x1xi32>
    %58 = arith.cmpi ne, %48, %57 : vector<8x1xi32>
    %59 = arith.andi %9, %58 : vector<8x1xi1>
    %60 = arith.subf %47, %56 : vector<8x1xf32>
    %cst_18 = arith.constant 0.000000e+00 : f32
    %61 = vector.broadcast %cst_18 : f32 to vector<8x1xf32>
    %62 = arith.select %59, %60, %61 : vector<8x1xi1>, vector<8x1xf32>
    %c0_19 = arith.constant 0 : index
    %c0_20 = arith.constant 0 : index
    %63 = vector.load %arg5[%c0_19, %c0_20] : memref<1x1xf32, #tpu.memory_space<vmem>>, vector<1x1xf32>
    %cst_21 = arith.constant dense<0.000000e+00> : vector<1xf32>
    %64 = vector.multi_reduction <add>, %62, %cst_21 [0] : vector<8x1xf32> to vector<1xf32>
    %65 = vector.shape_cast %64 : vector<1xf32> to vector<1x1xf32>
    %66 = arith.addf %63, %65 : vector<1x1xf32>
    %c0_22 = arith.constant 0 : index
    %c0_23 = arith.constant 0 : index
    %67 = vector.load %arg5[%c0_22, %c0_23] : memref<1x1xf32, #tpu.memory_space<vmem>>, vector<1x1xf32>
    tpu.vector_store %arg5[%c0_22, %c0_23], %66 {strides = array<i32>} : memref<1x1xf32, #tpu.memory_space<vmem>>, vector<1x1xf32>,
    %c0_24 = arith.constant 0 : index
    %c0_25 = arith.constant 0 : index
    %68 = vector.load %arg7[%c0_24, %c0_25] : memref<1x1xf32, #tpu.memory_space<vmem>>, vector<1x1xf32>
    %69 = arith.extui %59 : vector<8x1xi1> to vector<8x1xi32>
    %70 = arith.sitofp %69 : vector<8x1xi32> to vector<8x1xf32>
    %cst_26 = arith.constant dense<0.000000e+00> : vector<1xf32>
    %71 = vector.multi_reduction <add>, %70, %cst_26 [0] : vector<8x1xf32> to vector<1xf32>
    %72 = vector.shape_cast %71 : vector<1xf32> to vector<1x1xf32>
    %73 = arith.addf %68, %72 : vector<1x1xf32>
    %c0_27 = arith.constant 0 : index
    %c0_28 = arith.constant 0 : index
    %74 = vector.load %arg7[%c0_27, %c0_28] : memref<1x1xf32, #tpu.memory_space<vmem>>, vector<1x1xf32>
    tpu.vector_store %arg7[%c0_27, %c0_28], %73 {strides = array<i32>} : memref<1x1xf32, #tpu.memory_space<vmem>>, vector<1x1xf32>,
    %cst_29 = arith.constant 0.000000e+00 : f32
    %75 = vector.broadcast %cst_29 : f32 to vector<8x8xf32>
    %76 = arith.select %32, %41, %75 : vector<8x8xi1>, vector<8x8xf32>
    %cst_30 = arith.constant dense<0.000000e+00> : vector<8xf32>
    %77 = vector.multi_reduction <add>, %76, %cst_30 [1] : vector<8x8xf32> to vector<8xf32>
    %78 = vector.shape_cast %77 : vector<8xf32> to vector<8x1xf32>
    %79 = math.log %78 : vector<8x1xf32>
    %80 = arith.addf %36, %79 : vector<8x1xf32>
    %c0_31 = arith.constant 0 : index
    %c1 = arith.constant 1 : index
    %81 = vector.load %arg2[%c0_31, %c1] : memref<8x2xi32, #tpu.memory_space<vmem>>, vector<8x1xi32>
    %c3_i32_32 = arith.constant 3 : i32
    %82 = vector.broadcast %c3_i32_32 : i32 to vector<8x1xi32>
    %83 = arith.addi %82, %81 : vector<8x1xi32>
    %84 = vector.broadcast %83 : vector<8x1xi32> to vector<8x8xi32>
    %85 = arith.cmpi eq, %14, %84 : vector<8x8xi32>
    %cst_33 = arith.constant 0.000000e+00 : f32
    %86 = vector.broadcast %cst_33 : f32 to vector<8x8xf32>
    %87 = arith.select %85, %13, %86 : vector<8x8xi1>, vector<8x8xf32>
    %cst_34 = arith.constant dense<0.000000e+00> : vector<8xf32>
    %88 = vector.multi_reduction <add>, %87, %cst_34 [1] : vector<8x8xf32> to vector<8xf32>
    %89 = vector.shape_cast %88 : vector<8xf32> to vector<8x1xf32>
    %c-100_i32_35 = arith.constant -100 : i32
    %90 = vector.broadcast %c-100_i32_35 : i32 to vector<8x1xi32>
    %91 = arith.cmpi ne, %81, %90 : vector<8x1xi32>
    %92 = arith.andi %9, %91 : vector<8x1xi1>
    %93 = arith.subf %80, %89 : vector<8x1xf32>
    %cst_36 = arith.constant 0.000000e+00 : f32
    %94 = vector.broadcast %cst_36 : f32 to vector<8x1xf32>
    %95 = arith.select %92, %93, %94 : vector<8x1xi1>, vector<8x1xf32>
    %c0_37 = arith.constant 0 : index
    %c0_38 = arith.constant 0 : index
    %96 = vector.load %arg6[%c0_37, %c0_38] : memref<1x1xf32, #tpu.memory_space<vmem>>, vector<1x1xf32>
    %cst_39 = arith.constant dense<0.000000e+00> : vector<1xf32>
    %97 = vector.multi_reduction <add>, %95, %cst_39 [0] : vector<8x1xf32> to vector<1xf32>
    %98 = vector.shape_cast %97 : vector<1xf32> to vector<1x1xf32>
    %99 = arith.addf %96, %98 : vector<1x1xf32>
    %c0_40 = arith.constant 0 : index
    %c0_41 = arith.constant 0 : index
    %100 = vector.load %arg6[%c0_40, %c0_41] : memref<1x1xf32, #tpu.memory_space<vmem>>, vector<1x1xf32>
    tpu.vector_store %arg6[%c0_40, %c0_41], %99 {strides = array<i32>} : memref<1x1xf32, #tpu.memory_space<vmem>>, vector<1x1xf32>,
    %c0_42 = arith.constant 0 : index
    %c0_43 = arith.constant 0 : index
    %101 = vector.load %arg8[%c0_42, %c0_43] : memref<1x1xf32, #tpu.memory_space<vmem>>, vector<1x1xf32>
    %102 = arith.extui %92 : vector<8x1xi1> to vector<8x1xi32>
    %103 = arith.sitofp %102 : vector<8x1xi32> to vector<8x1xf32>
    %cst_44 = arith.constant dense<0.000000e+00> : vector<1xf32>
    %104 = vector.multi_reduction <add>, %103, %cst_44 [0] : vector<8x1xf32> to vector<1xf32>
    %105 = vector.shape_cast %104 : vector<1xf32> to vector<1x1xf32>
    %106 = arith.addf %101, %105 : vector<1x1xf32>
    %c0_45 = arith.constant 0 : index
    %c0_46 = arith.constant 0 : index
    %107 = vector.load %arg8[%c0_45, %c0_46] : memref<1x1xf32, #tpu.memory_space<vmem>>, vector<1x1xf32>
    tpu.vector_store %arg8[%c0_45, %c0_46], %106 {strides = array<i32>} : memref<1x1xf32, #tpu.memory_space<vmem>>, vector<1x1xf32>,
    %c0_i32_47 = arith.constant 0 : i32
    %108 = arith.cmpi eq, %arg0, %c0_i32_47 : i32
    %109 = arith.extui %108 : i1 to i32
    %c0_i32_48 = arith.constant 0 : i32
    %110 = arith.cmpi ne, %109, %c0_i32_48 : i32
    scf.if %110 {
      %cst_49 = arith.constant 0.000000e+00 : f32
      %111 = vector.broadcast %cst_49 : f32 to vector<1x1xf32>
      %c0_50 = arith.constant 0 : index
      %c0_51 = arith.constant 0 : index
      %112 = vector.load %arg5[%c0_50, %c0_51] : memref<1x1xf32, #tpu.memory_space<vmem>>, vector<1x1xf32>
      %c0_52 = arith.constant 0 : index
      %c0_53 = arith.constant 0 : index
      %113 = vector.load %arg7[%c0_52, %c0_53] : memref<1x1xf32, #tpu.memory_space<vmem>>, vector<1x1xf32>
      %114 = arith.divf %112, %113 : vector<1x1xf32>
      %115 = arith.addf %111, %114 : vector<1x1xf32>
      %c0_54 = arith.constant 0 : index
      %c0_55 = arith.constant 0 : index
      %116 = vector.load %arg6[%c0_54, %c0_55] : memref<1x1xf32, #tpu.memory_space<vmem>>, vector<1x1xf32>
      %c0_56 = arith.constant 0 : index
      %c0_57 = arith.constant 0 : index
      %117 = vector.load %arg8[%c0_56, %c0_57] : memref<1x1xf32, #tpu.memory_space<vmem>>, vector<1x1xf32>
      %118 = arith.divf %116, %117 : vector<1x1xf32>
      %119 = arith.addf %115, %118 : vector<1x1xf32>
      %c0_58 = arith.constant 0 : index
      %c0_59 = arith.constant 0 : index
      %120 = memref.load %arg1[%c0_58, %c0_59] : memref<1x1xf32, #tpu.memory_space<smem>>
      %121 = vector.broadcast %120 : f32 to vector<1x1xf32>
      %cst_60 = arith.constant 0.000000e+00 : f32
      %122 = vector.broadcast %cst_60 : f32 to vector<1x1xf32>
      %123 = arith.subf %122, %121 : vector<1x1xf32>
      %124 = math.exp %123 : vector<1x1xf32>
      %125 = arith.mulf %124, %119 : vector<1x1xf32>
      %126 = arith.addf %125, %121 : vector<1x1xf32>
      %c0_61 = arith.constant 0 : index
      %c0_62 = arith.constant 0 : index
      %127 = vector.load %arg4[%c0_61, %c0_62] : memref<1x1xf32, #tpu.memory_space<vmem>>, vector<1x1xf32>
      tpu.vector_store %arg4[%c0_61, %c0_62], %126 {strides = array<i32>} : memref<1x1xf32, #tpu.memory_space<vmem>>, vector<1x1xf32>,
    } else {
    }
    return
  }
  func.func @transform_0(%arg0: i32) -> (i32, i32) {
    %c0_i32 = arith.constant 0 : i32
    %c0_i32_0 = arith.constant 0 : i32
    %c0_i32_1 = arith.constant 0 : i32
    return %c0_i32, %c0_i32_0 : i32, i32
  }
  func.func @transform_1(%arg0: i32) -> (i32, i32) {
    %c0_i32 = arith.constant 0 : i32
    %c0_i32_0 = arith.constant 0 : i32
    return %arg0, %c0_i32 : i32, i32
  }
  func.func @transform_2(%arg0: i32) -> (i32, i32) {
    %c0_i32 = arith.constant 0 : i32
    %c0_i32_0 = arith.constant 0 : i32
    return %arg0, %c0_i32 : i32, i32
  }
  func.func @transform_3(%arg0: i32) -> (i32, i32) {
    %c0_i32 = arith.constant 0 : i32
    %c0_i32_0 = arith.constant 0 : i32
    %c0_i32_1 = arith.constant 0 : i32
    return %c0_i32, %c0_i32_0 : i32, i32
  }
}

</mosaic_0001>

<llo_original>
// kernel: tpu_custom_call.1
$region0: #{tpu_custom_call.1}
  #allocation0 [shape = 'u32[]', space=smem, size = 0x4, offset = 0x4, fixed_abs, tag = 'smem constant byte address 0x4 - core index']
  #allocation1 [shape = 'u32[72,128]{1,0:T(1,128)}', space=vmem, size = 0x9000, scoped, tag = 'internal scratch']
  #allocation2 [shape = 'f32[1,1]{1,0:T(1,128)}', space=vmem, size = 0x200, scoped, tag = 'scratch operand']
  #allocation3 [shape = 'f32[1,1]{1,0:T(1,128)}', space=vmem, size = 0x200, scoped, tag = 'scratch operand']
  #allocation4 [shape = 'f32[1,1]{1,0:T(1,128)}', space=vmem, size = 0x200, scoped, tag = 'scratch operand']
  #allocation5 [shape = 'f32[1,1]{1,0:T(1,128)}', space=vmem, size = 0x200, scoped, tag = 'scratch operand']
  #allocation6 [shape = 'f32[1,1]{1,0:T(1,128)S(6)}', space=smem, size = 0x200, scoped, tag = 'scoped memory for tpu_custom_call.1']
  %s0 = inlined_call_operand.<no memory space> [shape: f32[1,1], index: 0, kind: input, shape index: {}]
  %s1 = inlined_call_operand.vmem [shape: s32[8,2], index: 1, kind: input, shape index: {}]
  %s2 = inlined_call_operand.vmem [shape: f32[8,8], index: 2, kind: input, shape index: {}]
  %s3 = inlined_call_operand.hbm [shape: f32[1,1], index: 3, kind: output, shape index: {}]
  %s4 = sld [smem:[#allocation0]]
  $region30: #{tpu_custom_call.1} parent=0
    _
  %s6 = ssub.s32 1, %s4
  %s7 = scalar_select 0, %s6, %s4
  %8 = sst [smem:[#allocation6]] %s0
  $region1: #{tpu_custom_call.1} parent=0
    #allocation7 [shape = 'u8[512]{0}', space=vmem, size = 0x400, scoped, tag = 'output window, operand 0, single buffered']
    #allocation8 [shape = 's32[1]{0}', space=sflag, size = 0x4, scoped, tag = 'scoped memory for tpu_custom_call.1']
    %9 = vsyncpa [#allocation8], 0
    // Predicated region
    $region2: #{tpu_custom_call.1} parent=1 // pred_check
      _
    $region3: #{tpu_custom_call.1} parent=1 // pred_check_branch
      %11 = sbr.rel (0) target = $region5
    $region4: #{tpu_custom_call.1} parent=1 // pred_region
      _
    $region5: #{tpu_custom_call.1} parent=1 // pred_fallthru
      _
    // Predicated region
    $region6: #{tpu_custom_call.1} parent=1 // pred_check
      _
    $region7: #{tpu_custom_call.1} parent=1 // pred_check_branch
      %13 = sbr.rel (0) target = $region9
    $region8: #{tpu_custom_call.1} parent=1 // pred_region
      _
    $region9: #{tpu_custom_call.1} parent=1 // pred_fallthru
      _
    // Predicated region
    $region10: #{tpu_custom_call.1} parent=1 // pred_check
      _
    $region11: #{tpu_custom_call.1} parent=1 // pred_check_branch
      %15 = sbr.rel (0) target = $region13
    $region12: #{tpu_custom_call.1} parent=1 // pred_region
      _
    $region13: #{tpu_custom_call.1} parent=1 // pred_fallthru
      _
    %p16 = scmp.eq.s32.totalorder 0, 0
    // Predicated region
    $region14: #{tpu_custom_call.1} parent=1 // pred_check
      %p17 = pneg %p16
    $region15: #{tpu_custom_call.1} parent=1 // pred_check_branch
      %19 = sbr.rel (%p17) target = $region17
    $region16: #{tpu_custom_call.1} parent=1 // pred_region
      %vm20 = vcmask 0
      %21 = vst.msk [vmem:[#allocation2] sm:$0x1] %vm20, 0.0
      %22 = vst.msk [vmem:[#allocation3] sm:$0x1] %vm20, 0.0
      %23 = vst.msk [vmem:[#allocation4] sm:$0x1] %vm20, 0.0
      %24 = vst.msk [vmem:[#allocation5] sm:$0x1] %vm20, 0.0
    $region17: #{tpu_custom_call.1} parent=1 // pred_fallthru
      _
    %v25 = vld [vmem:[%s2] sm:$0xff]
    %v26 = vlaneseq
    %v27 = vshrl.u32 %v26, 7
    %s28 = smul.u32 0, 8
    %v29 = vstv %s28
    %v30 = vadd.s32 %v27, %v29
    %vm31 = vcmp.lt.s32.totalorder %v30, 8
    %v32 = vsel %vm31, 1, 0
    %vm33 = vcmp.eq.s32.totalorder %v32, 1
    %v34 = vsel %vm33, %v25, 0.0
    %v35 = vlaneseq
    %v36 = vand.u32 %v35, 127
    %vm37 = vcmp.ge.s32.totalorder %v36, 0
    %vm38 = vcmp.lt.s32.totalorder %v36, 3
    %vm39 = vmand %vm37, %vm38
    %v40 = vsel %vm39, %v34, -1e+30
    %vm41 = vcmask 64512
    %v42 = vsel %vm41, %v40, -inf
    %43 = vmax.xlane.f32.xlu0 %v42
    %v44 = vpop.xlane.xlu0 %43
    %v45 = vsel %vm39, %v44, 0.0
    %vm46 = vcmp.ge.s32.totalorder %v36, 3
    %vm47 = vcmp.lt.s32.totalorder %v36, 8
    %vm48 = vmand %vm46, %vm47
    %v49 = vsel %vm48, %v34, -1e+30
    %v50 = vsel %vm41, %v49, -inf
    %51 = vmax.xlane.f32.xlu0 %v50
    %v52 = vpop.xlane.xlu0 %51
    %v53 = vsel %vm48, %v52, %v45
    %v54 = vsub.f32 %v34, %v53
    %v55 = vmul.f32 %v54, 1.442695
    %v56 = vpow.pop %v55
    %v57 = vsel %vm39, %v56, 0.0
    %v58 = vsel %vm41, %v57, 0.0
    %59 = vadd.xlane.f32.xlu0 %v58
    %v60 = vpop.xlane.xlu0 %59
    %v61 = vlog2.pop %v60
    %v62 = vmul.f32 %v61, 0.6931472
    %v63 = vadd.f32 %v44, %v62
    %v64 = vld [vmem:[%s1] sm:$0xff]
    %65 = vset.pattern.permute.xlu0 0
    %66 = vperm.xlu0 %65, %v64
    %v67 = vpop.permute.xlu0 %66
    %vm68 = vcmp.eq.s32.totalorder %v36, %v67
    %v69 = vsel %vm68, %v34, 0.0
    %v70 = vsel %vm41, %v69, 0.0
    %71 = vadd.xlane.f32.xlu0 %v70
    %v72 = vpop.xlane.xlu0 %71
    %vm73 = vcmp.ne.s32.totalorder %v64, 4294967196
    %vm74 = vmand %vm31, %vm73
    %v75 = vsub.f32 %v63, %v72
    %v76 = vsel %vm74, %v75, 0.0
    %v77 = vld [vmem:[#allocation2] sm:$0x1]
    %vm78 = vcmask 7168
    %v79 = vsel %vm78, %v76, 0.0
    %v80 = vrot.slane %v79, 4
    %v81 = vadd.f32 %v79, %v80
    %v82 = vrot.slane %v81, 2
    %v83 = vadd.f32 %v81, %v82
    %v84 = vrot.slane %v83, 1
    %v85 = vadd.f32 %v83, %v84
    %v86 = vadd.f32 %v77, %v85
    %vm87 = vcmask 0
    %88 = vst.msk [vmem:[#allocation2] sm:$0x1] %vm87, %v86
    %v89 = vld [vmem:[#allocation4] sm:$0x1]
    %v90 = vsel %vm74, 1, 0
    %v91 = vcvt.s32.f32 %v90
    %v92 = vsel %vm78, %v91, 0.0
    %v93 = vrot.slane %v92, 4
    %v94 = vadd.f32 %v92, %v93
    %v95 = vrot.slane %v94, 2
    %v96 = vadd.f32 %v94, %v95
    %v97 = vrot.slane %v96, 1
    %v98 = vadd.f32 %v96, %v97
    %v99 = vadd.f32 %v89, %v98
    %100 = vst.msk [vmem:[#allocation4] sm:$0x1] %vm87, %v99
    %v101 = vsel %vm48, %v56, 0.0
    %v102 = vsel %vm41, %v101, 0.0
    %103 = vadd.xlane.f32.xlu0 %v102
    %v104 = vpop.xlane.xlu0 %103
    %v105 = vlog2.pop %v104
    %v106 = vmul.f32 %v105, 0.6931472
    %v107 = vadd.f32 %v52, %v106
    %v108 = vld [vmem:[%s1] sm:$0xff]
    %v109 = vadd.s32 %v108, 3
    %110 = vset.pattern.permute.xlu0 1
    %111 = vperm.xlu0 %110, %v109
    %v112 = vpop.permute.xlu0 %111
    %vm113 = vcmp.eq.s32.totalorder %v36, %v112
    %v114 = vsel %vm113, %v34, 0.0
    %v115 = vsel %vm41, %v114, 0.0
    %116 = vadd.xlane.f32.xlu0 %v115
    %v117 = vpop.xlane.xlu0 %116
    %vm118 = vcmp.ne.s32.totalorder %v108, 4294967196
    %vm119 = vmand %vm31, %vm118
    %v120 = vsub.f32 %v107, %v117
    %v121 = vsel %vm119, %v120, 0.0
    %v122 = vld [vmem:[#allocation3] sm:$0x1]
    %vm123 = vcmask 15368
    %v124 = vsel %vm123, %v121, 0.0
    %v125 = vrot.slane %v124, 4
    %v126 = vadd.f32 %v124, %v125
    %v127 = vrot.slane %v126, 2
    %v128 = vadd.f32 %v126, %v127
    %v129 = vrot.slane %v128, 1
    %v130 = vadd.f32 %v128, %v129
    %132 = vrot.lane.b32.xlu0 %v130, 127
    %v133 = vpop.permute.xlu0 %132
    %v135 = vadd.f32 %v122, %v133
    %136 = vst.msk [vmem:[#allocation3] sm:$0x1] %vm87, %v135
    %v137 = vld [vmem:[#allocation5] sm:$0x1]
    %v138 = vsel %vm119, 1, 0
    %v139 = vcvt.s32.f32 %v138
    %v140 = vsel %vm123, %v139, 0.0
    %v141 = vrot.slane %v140, 4
    %v142 = vadd.f32 %v140, %v141
    %v143 = vrot.slane %v142, 2
    %v144 = vadd.f32 %v142, %v143
    %v145 = vrot.slane %v144, 1
    %v146 = vadd.f32 %v144, %v145
    %148 = vrot.lane.b32.xlu0 %v146, 127
    %v149 = vpop.permute.xlu0 %148
    %v151 = vadd.f32 %v137, %v149
    %152 = vst.msk [vmem:[#allocation5] sm:$0x1] %vm87, %v151
    // Predicated region
    $region18: #{tpu_custom_call.1} parent=1 // pred_check
      %p153 = pneg %p16
    $region19: #{tpu_custom_call.1} parent=1 // pred_check_branch
      %155 = sbr.rel (%p153) target = $region21
    $region20: #{tpu_custom_call.1} parent=1 // pred_region
      %v156 = vld [vmem:[#allocation2] sm:$0x1]
      %v157 = vld [vmem:[#allocation4] sm:$0x1]
      %v158 = vrcp.pop %v157
      %v159 = vmul.f32 %v157, %v158
      %v160 = vsub.f32 1.0, %v159
      %v161 = vmul.f32 %v158, %v160
      %v162 = vadd.f32 %v158, %v161
      %vm163 = vweird.f32 %v157
      %vm164 = vweird.f32 %v158
      %vm165 = vmor %vm163, %vm164
      %v166 = vsel %vm165, %v158, %v162
      %v167 = vand.u32 2147483647, %v157
      %vm168 = vcmp.eq.f32.partialorder %v167, 8.507059e+37
      %v169 = vand.u32 %v157, 2147483648
      %v170 = vor.u32 1.1754944e-38, %v169
      %v171 = vsel %vm168, %v170, %v166
      %v172 = vmul.f32 %v156, %v171
      %v173 = vadd.f32 %v172, 0.0
      %v174 = vld [vmem:[#allocation3] sm:$0x1]
      %v175 = vld [vmem:[#allocation5] sm:$0x1]
      %v176 = vrcp.pop %v175
      %v177 = vmul.f32 %v175, %v176
      %v178 = vsub.f32 1.0, %v177
      %v179 = vmul.f32 %v176, %v178
      %v180 = vadd.f32 %v176, %v179
      %vm181 = vweird.f32 %v175
      %vm182 = vweird.f32 %v176
      %vm183 = vmor %vm181, %vm182
      %v184 = vsel %vm183, %v176, %v180
      %v185 = vand.u32 2147483647, %v175
      %vm186 = vcmp.eq.f32.partialorder %v185, 8.507059e+37
      %v187 = vand.u32 %v175, 2147483648
      %v188 = vor.u32 1.1754944e-38, %v187
      %v189 = vsel %vm186, %v188, %v184
      %v190 = vmul.f32 %v174, %v189
      %v191 = vadd.f32 %v173, %v190
      %s192 = sld [smem:[#allocation6]]
      %v193 = vstv %s192
      %v194 = vsub.f32 0.0, %v193
      %v195 = vmul.f32 %v194, 1.442695
      %v196 = vpow.pop %v195
      %v197 = vmul.f32 %v196, %v191
      %v198 = vadd.f32 %v197, %v193
      %199 = vst.msk [vmem:[#allocation7] sm:$0x1] %vm87, %v198
    $region21: #{tpu_custom_call.1} parent=1 // pred_fallthru
      _
    // Predicated region
    $region22: #{tpu_custom_call.1} parent=1 // pred_check
      _
    $region23: #{tpu_custom_call.1} parent=1 // pred_check_branch
      %201 = sbr.rel (0) target = $region25
    $region24: #{tpu_custom_call.1} parent=1 // pred_region
      %203 = vsyncadd [#allocation8], 0
      %s205 = sshll.u32 [#allocation7], 4
      %s206 = int_to_ptr.vmem [resolvable:$true] %s205
      %s207 = sshll.u32 %s3, 4
      %s208 = int_to_ptr.hbm [resolvable:$true] %s207
      %210 = dma.vmem_to_hbm [thread:$0]  %s206, 16, %s208, [#allocation8]
    $region25: #{tpu_custom_call.1} parent=1 // pred_fallthru
      _
    // Predicated region
    $region26: #{tpu_custom_call.1} parent=1 // pred_check
      _
    $region27: #{tpu_custom_call.1} parent=1 // pred_check_branch
      %212 = sbr.rel (0) target = $region29
    $region28: #{tpu_custom_call.1} parent=1 // pred_region
      %214 = dma.done [#allocation8], 16
    $region29: #{tpu_custom_call.1} parent=1 // pred_fallthru
      _
    %215 = vsyncpa [#allocation8], 1

</llo_original>
